<compile_context>
chip_gen: v5e
topology: v5e:2x2
jax: 0.10.0
libtpu: 0.0.40
codegen_flags: <defaults>
</compile_context>

<pallas_src>
import jax
import jax.numpy as jnp
from jax.experimental import pallas as pl
from jax.experimental.pallas import tpu as pltpu

UNMASKED_LABEL = -100.0                 # NDT convention for "not masked"
LOGRATE_LO, LOGRATE_HI = -2.5, 2.5      # RandomModel.LOGRATE_RANGE
LANE = 128                              # lane-dense last dim
MAX_TILE_R = 2048                       # 2048*128*4 B = 1 MiB per operand tile


def poisson_nll_kernel(labels_ref, rates_ref, partial_ref):
    """One tile: masked Poisson NLL + (8, 128) partial sum."""
    labels = labels_ref[...]            # (TILE_R, 128) f32
    rates = rates_ref[...]              # (TILE_R, 128) f32

    # PoissonNLLLoss(log_input=True, full=False, reduction='none')
    loss = jnp.exp(rates) - labels * rates
    # Zero out unmasked positions (also zeroes the UNMASKED_LABEL padding).
    loss = jnp.where(labels == UNMASKED_LABEL, 0.0, loss)

    tile_r = loss.shape[0]              # static, multiple of 8
    # Sublane-group reduction: (TILE_R, 128) -> (TILE_R//8, 8, 128) -> (8, 128)
    partial_ref[...] = loss.reshape(tile_r // 8, 8, LANE).sum(axis=0)


def random_model_forward(mask_labels, key):
    """Returns (loss_mean, rates) with rates shaped like mask_labels."""
    orig_shape = mask_labels.shape
    total = 1
    for d in orig_shape:
        total *= int(d)

    # rates ~ U[-2.5, 2.5), matching rand * (hi - lo) + lo.
    rates = jax.random.uniform(
        key, orig_shape, dtype=jnp.float32, minval=LOGRATE_LO, maxval=LOGRATE_HI
    )

    # --- lane-dense, tile-aligned 2-D layout -------------------------------
    rows = pl.cdiv(total, LANE)
    rows8 = ((rows + 7) // 8) * 8               # sublane multiple
    tile_r = min(MAX_TILE_R, rows8)             # shrink tile for tiny inputs
    num_tiles = pl.cdiv(rows8, tile_r)
    padded_rows = num_tiles * tile_r
    padded_total = padded_rows * LANE
    pad = padded_total - total

    labels_flat = mask_labels.reshape(-1).astype(jnp.float32)
    labels2d = jnp.pad(
        labels_flat, (0, pad), constant_values=jnp.float32(UNMASKED_LABEL)
    ).reshape(padded_rows, LANE)
    rates2d = jnp.pad(rates.reshape(-1), (0, pad)).reshape(padded_rows, LANE)

    # --- Pallas kernel: masked NLL + per-tile partial sums -----------------
    partials = pl.pallas_call(
        poisson_nll_kernel,
        out_shape=jax.ShapeDtypeStruct((num_tiles * 8, LANE), jnp.float32),
        grid=(num_tiles,),
        in_specs=[
            pl.BlockSpec((tile_r, LANE), lambda i: (i, 0)),   # labels tile
            pl.BlockSpec((tile_r, LANE), lambda i: (i, 0)),   # rates tile
        ],
        out_specs=pl.BlockSpec((8, LANE), lambda i: (i, 0)),  # partial sums
        compiler_params=pltpu.CompilerParams(
            dimension_semantics=("parallel",),
        ),
        cost_estimate=pl.CostEstimate(
            flops=3 * padded_total,
            transcendentals=padded_total,
            bytes_accessed=8 * padded_total + num_tiles * 8 * LANE * 4,
        ),
    )(labels2d, rates2d)

    # torch .mean() averages over every element of the ORIGINAL tensor
    # (zeroed / masked ones included); padding contributed exactly 0.
    loss_mean = jnp.sum(partials) / jnp.float32(total)
    return loss_mean, rates


if __name__ == "__main__":
    key = jax.random.PRNGKey(0)
    k_counts, k_mask, k_rates = jax.random.split(key, 3)

    batch, time, neurons = 2, 8, 32

    # Synthetic spike-count targets (Poisson-ish integer counts as float32).
    counts = jax.random.randint(
        k_counts, (batch, time, neurons), minval=0, maxval=6
    ).astype(jnp.float32)

    # Randomly mark ~70% of positions as UNMASKED (loss ignored there).
    unmasked = jax.random.bernoulli(k_mask, p=0.7, shape=(batch, time, neurons))
    mask_labels = jnp.where(unmasked, jnp.float32(UNMASKED_LABEL), counts)

    loss_mean, rates = random_model_forward(mask_labels, key=k_rates)
    jax.block_until_ready((loss_mean, rates))

    # Reference check (pure JAX) of the kernel-computed loss mean.
    ref_loss = jnp.exp(rates) - mask_labels * rates
    ref_loss = jnp.where(mask_labels == UNMASKED_LABEL, 0.0, ref_loss)
    ref_mean = ref_loss.mean()

    assert rates.shape == mask_labels.shape
    assert rates.dtype == jnp.float32
    assert float(rates.min()) >= LOGRATE_LO and float(rates.max()) <= LOGRATE_HI
    assert jnp.isfinite(loss_mean)
    assert abs(float(loss_mean) - float(ref_mean)) < 1e-4

    print("KERNEL_OK")
</pallas_src>

<mosaic_0001>
module attributes {stable_mosaic.version = 11 : i64} {
  func.func @poisson_nll_kernel(%arg0: i32, %arg1: memref<8x128xf32, #tpu.memory_space<vmem>>, %arg2: memref<8x128xf32, #tpu.memory_space<vmem>>, %arg3: memref<8x128xf32, #tpu.memory_space<vmem>>) attributes {dimension_semantics = [#tpu.dimension_semantics<parallel>], iteration_bounds = array<i64: 1>, scalar_prefetch = 0 : i64, scratch_operands = 0 : i64, tpu.core_type = #tpu.core_type<tc>, window_params = [{transform_indices = @transform_0, window_bounds = array<i64: 8, 128>}, {transform_indices = @transform_1, window_bounds = array<i64: 8, 128>}, {transform_indices = @transform_2, window_bounds = array<i64: 8, 128>}]} {
    %c0 = arith.constant 0 : index
    %c0_0 = arith.constant 0 : index
    %0 = vector.load %arg1[%c0, %c0_0] : memref<8x128xf32, #tpu.memory_space<vmem>>, vector<8x128xf32>
    %c0_1 = arith.constant 0 : index
    %c0_2 = arith.constant 0 : index
    %1 = vector.load %arg2[%c0_1, %c0_2] : memref<8x128xf32, #tpu.memory_space<vmem>>, vector<8x128xf32>
    %2 = math.exp %1 : vector<8x128xf32>
    %3 = arith.mulf %0, %1 : vector<8x128xf32>
    %4 = arith.subf %2, %3 : vector<8x128xf32>
    %cst = arith.constant -1.000000e+02 : f32
    %5 = vector.broadcast %cst : f32 to vector<8x128xf32>
    %6 = arith.cmpf oeq, %0, %5 : vector<8x128xf32>
    %cst_3 = arith.constant 0.000000e+00 : f32
    %7 = vector.broadcast %cst_3 : f32 to vector<8x128xf32>
    %8 = arith.select %6, %7, %4 : vector<8x128xi1>, vector<8x128xf32>
    %9 = vector.shape_cast %8 : vector<8x128xf32> to vector<1x8x128xf32>
    %cst_4 = arith.constant dense<0.000000e+00> : vector<8x128xf32>
    %10 = vector.multi_reduction <add>, %9, %cst_4 [0] : vector<1x8x128xf32> to vector<8x128xf32>
    %c0_5 = arith.constant 0 : index
    %c0_6 = arith.constant 0 : index
    %11 = vector.load %arg3[%c0_5, %c0_6] : memref<8x128xf32, #tpu.memory_space<vmem>>, vector<8x128xf32>
    tpu.vector_store %arg3[%c0_5, %c0_6], %10 {strides = array<i32>} : memref<8x128xf32, #tpu.memory_space<vmem>>, vector<8x128xf32>,
    return
  }
  func.func @transform_0(%arg0: i32) -> (i32, i32) {
    %c0_i32 = arith.constant 0 : i32
    %c0_i32_0 = arith.constant 0 : i32
    return %arg0, %c0_i32 : i32, i32
  }
  func.func @transform_1(%arg0: i32) -> (i32, i32) {
    %c0_i32 = arith.constant 0 : i32
    %c0_i32_0 = arith.constant 0 : i32
    return %arg0, %c0_i32 : i32, i32
  }
  func.func @transform_2(%arg0: i32) -> (i32, i32) {
    %c0_i32 = arith.constant 0 : i32
    %c0_i32_0 = arith.constant 0 : i32
    return %arg0, %c0_i32 : i32, i32
  }
}

</mosaic_0001>

<llo_original>
// kernel: tpu_custom_call.1
$region0: #{tpu_custom_call.1}
  #allocation0 [shape = 'u32[]', space=smem, size = 0x4, offset = 0x4, fixed_abs, tag = 'smem constant byte address 0x4 - core index']
  #allocation1 [shape = 'u32[72,128]{1,0:T(1,128)}', space=vmem, size = 0x9000, scoped, tag = 'internal scratch']
  %s0 = inlined_call_operand.hbm [shape: f32[8,128], index: 0, kind: input, shape index: {}]
  %s1 = inlined_call_operand.hbm [shape: f32[8,128], index: 1, kind: input, shape index: {}]
  %s2 = inlined_call_operand.hbm [shape: f32[8,128], index: 2, kind: output, shape index: {}]
  %s3 = sld [smem:[#allocation0]]
  $region26: #{tpu_custom_call.1} parent=0
    _
  %s5 = ssub.s32 1, %s3
  %s6 = scalar_select 0, %s5, %s3
  $region1: #{tpu_custom_call.1} parent=0
    #allocation2 [shape = 'u8[4096]{0}', space=vmem, size = 0x1000, scoped, tag = 'input window, operand 0, single buffered']
    #allocation3 [shape = 's32[1]{0}', space=sflag, size = 0x4, scoped, tag = 'scoped memory for tpu_custom_call.1']
    #allocation4 [shape = 's32[1]{0}', space=sflag, size = 0x4, scoped, tag = 'scoped memory for tpu_custom_call.1']
    #allocation5 [shape = 'u8[4096]{0}', space=vmem, size = 0x1000, scoped, tag = 'input window, operand 1, single buffered']
    #allocation6 [shape = 's32[1]{0}', space=sflag, size = 0x4, scoped, tag = 'scoped memory for tpu_custom_call.1']
    #allocation7 [shape = 'u8[4096]{0}', space=vmem, size = 0x1000, scoped, tag = 'output window, operand 0, single buffered']
    %7 = vsyncpa [#allocation3], 0
    %8 = vsyncpa [#allocation6], 0
    %9 = vsyncpa [#allocation4], 0
    // Predicated region
    $region2: #{tpu_custom_call.1} parent=1 // pred_check
      _
    $region3: #{tpu_custom_call.1} parent=1 // pred_check_branch
      %11 = sbr.rel (0) target = $region5
    $region4: #{tpu_custom_call.1} parent=1 // pred_region
      %13 = vsyncadd [#allocation3], 0
      %s15 = sshll.u32 %s0, 4
      %s16 = int_to_ptr.hbm [resolvable:$true] %s15
      %s17 = sshll.u32 [#allocation2], 4
      %s18 = int_to_ptr.vmem [resolvable:$true] %s17
      %20 = dma.hbm_to_vmem [thread:$0]  %s16, 128, %s18, [#allocation3]
    $region5: #{tpu_custom_call.1} parent=1 // pred_fallthru
      _
    // Predicated region
    $region6: #{tpu_custom_call.1} parent=1 // pred_check
      _
    $region7: #{tpu_custom_call.1} parent=1 // pred_check_branch
      %22 = sbr.rel (0) target = $region9
    $region8: #{tpu_custom_call.1} parent=1 // pred_region
      %24 = vsyncadd [#allocation6], 0
      %s26 = sshll.u32 %s1, 4
      %s27 = int_to_ptr.hbm [resolvable:$true] %s26
      %s28 = sshll.u32 [#allocation5], 4
      %s29 = int_to_ptr.vmem [resolvable:$true] %s28
      %31 = dma.hbm_to_vmem [thread:$0]  %s27, 128, %s29, [#allocation6]
    $region9: #{tpu_custom_call.1} parent=1 // pred_fallthru
      _
    // Predicated region
    $region10: #{tpu_custom_call.1} parent=1 // pred_check
      _
    $region11: #{tpu_custom_call.1} parent=1 // pred_check_branch
      %33 = sbr.rel (0) target = $region13
    $region12: #{tpu_custom_call.1} parent=1 // pred_region
      %35 = dma.done [#allocation3], 128
    $region13: #{tpu_custom_call.1} parent=1 // pred_fallthru
      _
    // Predicated region
    $region14: #{tpu_custom_call.1} parent=1 // pred_check
      _
    $region15: #{tpu_custom_call.1} parent=1 // pred_check_branch
      %37 = sbr.rel (0) target = $region17
    $region16: #{tpu_custom_call.1} parent=1 // pred_region
      %39 = dma.done [#allocation6], 128
    $region17: #{tpu_custom_call.1} parent=1 // pred_fallthru
      _
    %v40 = vld [vmem:[#allocation2] sm:$0xff]
    %v41 = vld [vmem:[#allocation5] sm:$0xff]
    %v42 = vmul.f32 %v41, 1.442695
    %v43 = vpow.pop %v42
    %v44 = vmul.f32 %v40, %v41
    %v45 = vsub.f32 %v43, %v44
    %vm46 = vcmp.eq.f32.partialorder %v40, -100.0
    %v47 = vsel %vm46, 0.0, %v45
    %v48 = vadd.f32 %v47, 0.0
    %49 = vst [vmem:[#allocation7] sm:$0xff] %v48
    // Predicated region
    $region18: #{tpu_custom_call.1} parent=1 // pred_check
      _
    $region19: #{tpu_custom_call.1} parent=1 // pred_check_branch
      %51 = sbr.rel (0) target = $region21
    $region20: #{tpu_custom_call.1} parent=1 // pred_region
      %53 = vsyncadd [#allocation4], 0
      %s55 = sshll.u32 [#allocation7], 4
      %s56 = int_to_ptr.vmem [resolvable:$true] %s55
      %s57 = sshll.u32 %s2, 4
      %s58 = int_to_ptr.hbm [resolvable:$true] %s57
      %60 = dma.vmem_to_hbm [thread:$0]  %s56, 128, %s58, [#allocation4]
    $region21: #{tpu_custom_call.1} parent=1 // pred_fallthru
      _
    // Predicated region
    $region22: #{tpu_custom_call.1} parent=1 // pred_check
      _
    $region23: #{tpu_custom_call.1} parent=1 // pred_check_branch
      %62 = sbr.rel (0) target = $region25
    $region24: #{tpu_custom_call.1} parent=1 // pred_region
      %64 = dma.done [#allocation4], 128
    $region25: #{tpu_custom_call.1} parent=1 // pred_fallthru
      _
    %65 = vsyncpa [#allocation3], 1
    %66 = vsyncpa [#allocation6], 1
    %67 = vsyncpa [#allocation4], 1

</llo_original>
